<compile_context>
chip_gen: v7x
topology: tpu7x:2x2x1
jax: 0.10.0
libtpu: 0.0.40
codegen_flags: <defaults>
</compile_context>

<pallas_src>
import math

import numpy as np
import jax
import jax.numpy as jnp
from jax import lax
from jax.experimental import pallas as pl
from jax.experimental.pallas import tpu as pltpu


def _round_up(x, m):
    return ((x + m - 1) // m) * m


def _pos_matmul_kernel(lhs_ref, sel_ref, out_ref):
    # Single fused MXU matmul: block-diagonal embedding LHS x constant one-hot selector
    # RHS -> already-concatenated, already-channel-sliced position embedding.
    out_ref[...] = jnp.dot(
        lhs_ref[...],
        sel_ref[...],
        preferred_element_type=jnp.float32,
        precision=lax.Precision.HIGHEST,  # exact gather; see precision note above
    )


def _build_selector(h, w, d, k_pad, n_pad):
    """Trace-time constant: stacked one-hot selector, shape (k_pad, n_pad) f32."""
    n = h * w * d
    cols = np.arange(n)
    sel = np.zeros((k_pad, n_pad), np.float32)
    sel[cols // (w * d), cols] = 1.0            # rows [0, h)      : selects i = c // (w*d)
    sel[h + (cols // d) % w, cols] = 1.0        # rows [h, h+w)    : selects j = (c // d) % w
    sel[h + w + (cols % d), cols] = 1.0         # rows [h+w, h+w+d): selects k = c % d
    return jnp.asarray(sel)


def position_embedding_learned(x, col_w, row_w, dep_w, orig_channels):
    """x: (B, _, h, w, d); *_w: (50, C_emb). Returns (B, orig_channels, h*w*d) f32."""
    b = x.shape[0]
    h, w, d = x.shape[2], x.shape[3], x.shape[4]
    n = h * w * d
    c = col_w.shape[1]

    k = h + w + d
    k_pad = _round_up(max(k, 8), 8)
    n_pad = _round_up(max(n, 128), 128)
    m_pad = _round_up(max(orig_channels, 8), 8)

    # Wrapper glue (parameter prep): block-diagonal LHS holding the three gathered
    # embedding tables with the channel axis on sublanes, sliced to orig_channels.
    x_t = jnp.transpose(col_w[:h].astype(jnp.float32))   # (C, h)  col_embed over h
    y_t = jnp.transpose(row_w[:w].astype(jnp.float32))   # (C, w)  row_embed over w
    z_t = jnp.transpose(dep_w[:d].astype(jnp.float32))   # (C, d)  dep_embed over d

    full = jnp.zeros((3 * c, k_pad), jnp.float32)
    full = full.at[0 * c:1 * c, 0:h].set(x_t)
    full = full.at[1 * c:2 * c, h:h + w].set(y_t)
    full = full.at[2 * c:3 * c, h + w:h + w + d].set(z_t)
    lhs = full[:orig_channels]                            # channel slice done here (free)
    if m_pad > orig_channels:
        lhs = jnp.pad(lhs, ((0, m_pad - orig_channels), (0, 0)))

    sel = _build_selector(h, w, d, k_pad, n_pad)          # trace-time constant one-hot RHS

    pos_pad = pl.pallas_call(
        _pos_matmul_kernel,
        out_shape=jax.ShapeDtypeStruct((m_pad, n_pad), jnp.float32),
        grid=(1,),
        in_specs=[pl.BlockSpec((m_pad, k_pad), lambda i: (0, 0)),
                  pl.BlockSpec((k_pad, n_pad), lambda i: (0, 0))],
        out_specs=pl.BlockSpec((m_pad, n_pad), lambda i: (0, 0)),
        compiler_params=pltpu.CompilerParams(dimension_semantics=("arbitrary",)),
    )(lhs, sel)

    pos = pos_pad[:orig_channels, :n]
    # Batch repeat is a pure broadcast of an identical 15 KB block: do it once in the
    # wrapper instead of re-running the kernel per batch element.
    return jnp.broadcast_to(pos[None], (b, orig_channels, n)).astype(jnp.float32)


def reference(x, col_w, row_w, dep_w, orig_channels):
    b, _, h, w, d = x.shape
    xe, ye, ze = col_w[:h], row_w[:w], dep_w[:d]
    c = xe.shape[-1]
    pos = jnp.concatenate([
        jnp.broadcast_to(xe[:, None, None, :], (h, w, d, c)),
        jnp.broadcast_to(ye[None, :, None, :], (h, w, d, c)),
        jnp.broadcast_to(ze[None, None, :, :], (h, w, d, c)),
    ], axis=-1)[..., :orig_channels]
    pos = jnp.transpose(pos, (3, 0, 1, 2)).reshape(orig_channels, -1)
    return jnp.broadcast_to(pos[None], (b, orig_channels, h * w * d)).astype(jnp.float32)


if __name__ == "__main__":
    channels = 32                                    # orig_channels
    c_emb = int(math.ceil(channels / 6) * 2)         # per-table embedding dim = 12

    key = jax.random.PRNGKey(0)
    k1, k2, k3, k4 = jax.random.split(key, 4)
    # reset_parameters(): uniform for row/col; dep keeps default nn.Embedding init (N(0,1)).
    row_w = jax.random.uniform(k1, (50, c_emb), jnp.float32)
    col_w = jax.random.uniform(k2, (50, c_emb), jnp.float32)
    dep_w = jax.random.normal(k3, (50, c_emb), jnp.float32)

    # tensor: (B, C_in, h, w, d) — only batch and the spatial dims matter.
    x = jax.random.normal(k4, (2, 3, 4, 5, 6), jnp.float32)

    out = position_embedding_learned(x, col_w, row_w, dep_w, channels)
    out = jax.block_until_ready(out)

    ref = reference(x, col_w, row_w, dep_w, channels)
    assert out.shape == (2, channels, 4 * 5 * 6), out.shape
    assert jnp.allclose(out, ref, atol=1e-2, rtol=1e-2), float(jnp.max(jnp.abs(out - ref)))
    print("KERNEL_OK")
</pallas_src>

<mosaic_0001>
module attributes {stable_mosaic.version = 11 : i64} {
  func.func @_pos_matmul_kernel(%arg0: i32, %arg1: memref<32x16xf32, #tpu.memory_space<vmem>>, %arg2: memref<16x128xf32, #tpu.memory_space<vmem>>, %arg3: memref<32x128xf32, #tpu.memory_space<vmem>>) attributes {dimension_semantics = [#tpu.dimension_semantics<arbitrary>], iteration_bounds = array<i64: 1>, scalar_prefetch = 0 : i64, scratch_operands = 0 : i64, tpu.core_type = #tpu.core_type<tc>, window_params = [{pipeline_mode = #tpu.pipeline_mode<synchronous>, transform_indices = @transform_0, window_bounds = array<i64: 32, 16>}, {pipeline_mode = #tpu.pipeline_mode<synchronous>, transform_indices = @transform_1, window_bounds = array<i64: 16, 128>}, {pipeline_mode = #tpu.pipeline_mode<synchronous>, transform_indices = @transform_2, window_bounds = array<i64: 32, 128>}]} {
    %c0 = arith.constant 0 : index
    %c0_0 = arith.constant 0 : index
    %0 = vector.load %arg1[%c0, %c0_0] : memref<32x16xf32, #tpu.memory_space<vmem>>, vector<32x16xf32>
    %c0_1 = arith.constant 0 : index
    %c0_2 = arith.constant 0 : index
    %1 = vector.load %arg2[%c0_1, %c0_2] : memref<16x128xf32, #tpu.memory_space<vmem>>, vector<16x128xf32>
    %cst = arith.constant dense<0.000000e+00> : vector<32x128xf32>
    %2 = tpu.matmul %0, %1, %cst {dimension_numbers = #tpu.dot_dimension_numbers<[1], [0], [0], [1], [0, 0, 1, 1], [], []>, precision = #tpu.contract_precision<fp32>} : vector<32x16xf32>, vector<16x128xf32>, vector<32x128xf32> -> vector<32x128xf32>
    %c0_3 = arith.constant 0 : index
    %c0_4 = arith.constant 0 : index
    %3 = vector.load %arg3[%c0_3, %c0_4] : memref<32x128xf32, #tpu.memory_space<vmem>>, vector<32x128xf32>
    tpu.vector_store %arg3[%c0_3, %c0_4], %2 {strides = array<i32>} : memref<32x128xf32, #tpu.memory_space<vmem>>, vector<32x128xf32>,
    return
  }
  func.func @transform_0(%arg0: i32) -> (i32, i32) {
    %c0_i32 = arith.constant 0 : i32
    %c0_i32_0 = arith.constant 0 : i32
    %c0_i32_1 = arith.constant 0 : i32
    return %c0_i32, %c0_i32_0 : i32, i32
  }
  func.func @transform_1(%arg0: i32) -> (i32, i32) {
    %c0_i32 = arith.constant 0 : i32
    %c0_i32_0 = arith.constant 0 : i32
    %c0_i32_1 = arith.constant 0 : i32
    return %c0_i32, %c0_i32_0 : i32, i32
  }
  func.func @transform_2(%arg0: i32) -> (i32, i32) {
    %c0_i32 = arith.constant 0 : i32
    %c0_i32_0 = arith.constant 0 : i32
    %c0_i32_1 = arith.constant 0 : i32
    return %c0_i32, %c0_i32_0 : i32, i32
  }
}

</mosaic_0001>

<llo_original>
// kernel: tpu_custom_call.1
$region0: #{tpu_custom_call.1}
  #allocation0 [shape = 'u32[]', space=smem, size = 0x4, offset = 0x4, fixed_abs, tag = 'smem constant byte address 0x4 - core index']
  #allocation1 [shape = 'u32[144,128]{1,0:T(1,128)}', space=vmem, size = 0x12000, scoped, tag = 'internal scratch']
  %s0 = inlined_call_operand.vmem [shape: f32[32,16], index: 0, kind: input, shape index: {}]
  %s1 = inlined_call_operand.vmem [shape: f32[16,128], index: 1, kind: input, shape index: {}]
  %s2 = inlined_call_operand.hbm [shape: f32[32,128], index: 2, kind: output, shape index: {}]
  %s3 = sld [smem:[#allocation0]]
  $region18: #{tpu_custom_call.1} parent=0
    _
  %s5 = ssub.s32 1, %s3
  %s6 = scalar_select 0, %s5, %s3
  $region1: #{tpu_custom_call.1} parent=0
    #allocation2 [shape = 'u8[16384]{0}', space=vmem, size = 0x4000, scoped, tag = 'output window, operand 0, single buffered']
    #allocation3 [shape = 's32[1]{0}', space=sflag, size = 0x4, scoped, tag = 'scoped memory for tpu_custom_call.1']
    %7 = vsyncpa [#allocation3], 0
    // Predicated region
    $region2: #{tpu_custom_call.1} parent=1 // pred_check
      _
    $region3: #{tpu_custom_call.1} parent=1 // pred_check_branch
      %9 = sbr.rel (0) target = $region5
    $region4: #{tpu_custom_call.1} parent=1 // pred_region
      _
    $region5: #{tpu_custom_call.1} parent=1 // pred_fallthru
      _
    // Predicated region
    $region6: #{tpu_custom_call.1} parent=1 // pred_check
      _
    $region7: #{tpu_custom_call.1} parent=1 // pred_check_branch
      %11 = sbr.rel (0) target = $region9
    $region8: #{tpu_custom_call.1} parent=1 // pred_region
      _
    $region9: #{tpu_custom_call.1} parent=1 // pred_fallthru
      _
    %v12 = vld [vmem:[%s0] sm:$0xff]
    %v13 = vld [vmem:[%s0 + $0x8] sm:$0xff]
    %v14 = vld [vmem:[%s0 + $0x10] sm:$0xff]
    %v15 = vld [vmem:[%s0 + $0x18] sm:$0xff]
    %v16 = vld [vmem:[%s1] sm:$0xff]
    %v17 = vld [vmem:[%s1 + $0x8] sm:$0xff]
    %vm18 = vcmask 130048
    %v20 = vsel %vm18, %v12, 0
    %v23 = vsel %vm18, %v13, 0
    %v26 = vsel %vm18, %v14, 0
    %v29 = vsel %vm18, %v15, 0
    %31 = vmatprep.subr.mxu0 0.0
    %v32 = vand.u32 %v16, 4294901760
    %33 = vmatpush1.msra.mxu0 %v32
    %34 = vmatprep.subr.mxu0 0.0
    %v35 = vand.u32 %v17, 4294901760
    %36 = vmatpush1.msra.mxu0 %v35
    %37 = vmatprep.subr.mxu0 0.0
    %38 = vmatpush1.msra.mxu0 0.0
    %39 = vmatprep.subr.mxu0 0.0
    %40 = vmatpush1.msra.mxu0 0.0
    %41 = vmatprep.subr.mxu0 0.0
    %42 = vmatpush1.msra.mxu0 0.0
    %43 = vmatprep.subr.mxu0 0.0
    %44 = vmatpush1.msra.mxu0 0.0
    %45 = vmatprep.subr.mxu0 0.0
    %46 = vmatpush1.msra.mxu0 0.0
    %47 = vmatprep.subr.mxu0 0.0
    %48 = vmatpush1.msra.mxu0 0.0
    %49 = vmatprep.subr.mxu0 0.0
    %50 = vmatpush1.msra.mxu0 0.0
    %51 = vmatprep.subr.mxu0 0.0
    %52 = vmatpush1.msra.mxu0 0.0
    %53 = vmatprep.subr.mxu0 0.0
    %54 = vmatpush1.msra.mxu0 0.0
    %55 = vmatprep.subr.mxu0 0.0
    %56 = vmatpush1.msra.mxu0 0.0
    %57 = vmatprep.subr.mxu0 0.0
    %58 = vmatpush1.msra.mxu0 0.0
    %59 = vmatprep.subr.mxu0 0.0
    %60 = vmatpush1.msra.mxu0 0.0
    %61 = vmatprep.subr.mxu0 0.0
    %62 = vmatpush1.msra.mxu0 0.0
    %63 = vmatprep.subr.mxu0 0.0
    %64 = vmatpush1.msra.mxu0 0.0
    %65 = vmatprep.subr.mxu0 0.0
    %66 = vmatpush1.msra.mxu0 0.0
    %67 = vmatprep.subr.mxu0 0.0
    %68 = vmatpush1.msra.mxu0 0.0
    %69 = vmatprep.subr.mxu0 0.0
    %70 = vmatpush1.msra.mxu0 0.0
    %71 = vmatprep.subr.mxu0 0.0
    %72 = vmatpush1.msra.mxu0 0.0
    %73 = vmatprep.subr.mxu0 0.0
    %74 = vmatpush1.msra.mxu0 0.0
    %75 = vmatprep.subr.mxu0 0.0
    %76 = vmatpush1.msra.mxu0 0.0
    %77 = vmatprep.subr.mxu0 0.0
    %78 = vmatpush1.msra.mxu0 0.0
    %79 = vmatprep.subr.mxu0 0.0
    %80 = vmatpush1.msra.mxu0 0.0
    %81 = vmatprep.subr.mxu0 0.0
    %82 = vmatpush1.msra.mxu0 0.0
    %83 = vmatprep.subr.mxu0 0.0
    %84 = vmatpush1.msra.mxu0 0.0
    %85 = vmatprep.subr.mxu0 0.0
    %86 = vmatpush1.msra.mxu0 0.0
    %87 = vmatprep.subr.mxu0 0.0
    %88 = vmatpush1.msra.mxu0 0.0
    %89 = vmatprep.subr.mxu0 0.0
    %90 = vmatpush1.msra.mxu0 0.0
    %91 = vmatprep.subr.mxu0 0.0
    %92 = vmatpush1.msra.mxu0 0.0
    %93 = vmatprep.subr.mxu0 0.0
    %94 = vmatpush1.msra.mxu0 0.0
    %95 = vmatprep.subr.mxu0 0.0
    %96 = vmatpush1.msra.mxu0 0.0
    %97 = vmatprep.mubr.f32.mxu0 0.0
    %v98 = vand.u32 %v20, 4294901760
    %v99 = vsub.f32 %v20, %v98
    %v100 = vand.u32 %v99, 4294901760
    %v101 = vsub.f32 %v99, %v100
    %v102 = vand.u32 %v101, 4294901760
    %103 = vmatmul.mubr.f32.gmra.mrb[0].mxu0 %v102
    %v104 = vpop.f32.mrb[0].mxu0
    %v105 = vadd.f32 0.0, %v104
    %v106 = vpop.f32.mrb[0].mxu0
    %107 = vmatprep.mubr.f32.mxu0 0.0
    %v108 = vand.u32 %v23, 4294901760
    %v109 = vsub.f32 %v23, %v108
    %v110 = vand.u32 %v109, 4294901760
    %v111 = vsub.f32 %v109, %v110
    %v112 = vand.u32 %v111, 4294901760
    %113 = vmatmul.mubr.f32.gmra.mrb[0].mxu0 %v112
    %v114 = vpop.f32.mrb[0].mxu0
    %v115 = vadd.f32 0.0, %v114
    %v116 = vpop.f32.mrb[0].mxu0
    %117 = vmatprep.mubr.f32.mxu0 0.0
    %v118 = vand.u32 %v26, 4294901760
    %v119 = vsub.f32 %v26, %v118
    %v120 = vand.u32 %v119, 4294901760
    %v121 = vsub.f32 %v119, %v120
    %v122 = vand.u32 %v121, 4294901760
    %123 = vmatmul.mubr.f32.gmra.mrb[0].mxu0 %v122
    %v124 = vpop.f32.mrb[0].mxu0
    %v125 = vadd.f32 0.0, %v124
    %v126 = vpop.f32.mrb[0].mxu0
    %127 = vmatprep.mubr.f32.mxu0 0.0
    %v128 = vand.u32 %v29, 4294901760
    %v129 = vsub.f32 %v29, %v128
    %v130 = vand.u32 %v129, 4294901760
    %v131 = vsub.f32 %v129, %v130
    %v132 = vand.u32 %v131, 4294901760
    %133 = vmatmul.mubr.f32.gmra.mrb[0].mxu0 %v132
    %v134 = vpop.f32.mrb[0].mxu0
    %v135 = vadd.f32 0.0, %v134
    %v136 = vpop.f32.mrb[0].mxu0
    %137 = vdwg.mxu0
    %138 = vmatprep.subr.mxu0 0.0
    %v139 = vand.u32 %v16, 4294901760
    %v140 = vsub.f32 %v16, %v139
    %v141 = vand.u32 %v140, 4294901760
    %v142 = vsub.f32 %v140, %v141
    %v143 = vand.u32 %v142, 4294901760
    %144 = vmatpush1.msra.mxu0 %v143
    %145 = vmatprep.subr.mxu0 0.0
    %v146 = vand.u32 %v17, 4294901760
    %v147 = vsub.f32 %v17, %v146
    %v148 = vand.u32 %v147, 4294901760
    %v149 = vsub.f32 %v147, %v148
    %v150 = vand.u32 %v149, 4294901760
    %151 = vmatpush1.msra.mxu0 %v150
    %152 = vmatprep.subr.mxu0 0.0
    %153 = vmatpush1.msra.mxu0 0.0
    %154 = vmatprep.subr.mxu0 0.0
    %155 = vmatpush1.msra.mxu0 0.0
    %156 = vmatprep.subr.mxu0 0.0
    %157 = vmatpush1.msra.mxu0 0.0
    %158 = vmatprep.subr.mxu0 0.0
    %159 = vmatpush1.msra.mxu0 0.0
    %160 = vmatprep.subr.mxu0 0.0
    %161 = vmatpush1.msra.mxu0 0.0
    %162 = vmatprep.subr.mxu0 0.0
    %163 = vmatpush1.msra.mxu0 0.0
    %164 = vmatprep.subr.mxu0 0.0
    %165 = vmatpush1.msra.mxu0 0.0
    %166 = vmatprep.subr.mxu0 0.0
    %167 = vmatpush1.msra.mxu0 0.0
    %168 = vmatprep.subr.mxu0 0.0
    %169 = vmatpush1.msra.mxu0 0.0
    %170 = vmatprep.subr.mxu0 0.0
    %171 = vmatpush1.msra.mxu0 0.0
    %172 = vmatprep.subr.mxu0 0.0
    %173 = vmatpush1.msra.mxu0 0.0
    %174 = vmatprep.subr.mxu0 0.0
    %175 = vmatpush1.msra.mxu0 0.0
    %176 = vmatprep.subr.mxu0 0.0
    %177 = vmatpush1.msra.mxu0 0.0
    %178 = vmatprep.subr.mxu0 0.0
    %179 = vmatpush1.msra.mxu0 0.0
    %180 = vmatprep.subr.mxu0 0.0
    %181 = vmatpush1.msra.mxu0 0.0
    %182 = vmatprep.subr.mxu0 0.0
    %183 = vmatpush1.msra.mxu0 0.0
    %184 = vmatprep.subr.mxu0 0.0
    %185 = vmatpush1.msra.mxu0 0.0
    %186 = vmatprep.subr.mxu0 0.0
    %187 = vmatpush1.msra.mxu0 0.0
    %188 = vmatprep.subr.mxu0 0.0
    %189 = vmatpush1.msra.mxu0 0.0
    %190 = vmatprep.subr.mxu0 0.0
    %191 = vmatpush1.msra.mxu0 0.0
    %192 = vmatprep.subr.mxu0 0.0
    %193 = vmatpush1.msra.mxu0 0.0
    %194 = vmatprep.subr.mxu0 0.0
    %195 = vmatpush1.msra.mxu0 0.0
    %196 = vmatprep.subr.mxu0 0.0
    %197 = vmatpush1.msra.mxu0 0.0
    %198 = vmatprep.subr.mxu0 0.0
    %199 = vmatpush1.msra.mxu0 0.0
    %200 = vmatprep.subr.mxu0 0.0
    %201 = vmatpush1.msra.mxu0 0.0
    %202 = vmatprep.subr.mxu0 0.0
    %203 = vmatpush1.msra.mxu0 0.0
    %204 = vmatprep.subr.mxu0 0.0
    %205 = vmatpush1.msra.mxu0 0.0
    %206 = vmatprep.subr.mxu0 0.0
    %207 = vmatpush1.msra.mxu0 0.0
    %208 = vmatprep.subr.mxu0 0.0
    %209 = vmatpush1.msra.mxu0 0.0
    %210 = vmatprep.subr.mxu0 0.0
    %211 = vmatpush1.msra.mxu0 0.0
    %212 = vmatprep.mubr.f32.mxu0 0.0
    %v213 = vand.u32 %v20, 4294901760
    %214 = vmatmul.mubr.f32.gmra.mrb[0].mxu0 %v213
    %v215 = vpop.f32.mrb[0].mxu0
    %v216 = vadd.f32 %v105, %v215
    %v217 = vpop.f32.mrb[0].mxu0
    %218 = vmatprep.mubr.f32.mxu0 0.0
    %v219 = vand.u32 %v23, 4294901760
    %220 = vmatmul.mubr.f32.gmra.mrb[0].mxu0 %v219
    %v221 = vpop.f32.mrb[0].mxu0
    %v222 = vadd.f32 %v115, %v221
    %v223 = vpop.f32.mrb[0].mxu0
    %224 = vmatprep.mubr.f32.mxu0 0.0
    %v225 = vand.u32 %v26, 4294901760
    %226 = vmatmul.mubr.f32.gmra.mrb[0].mxu0 %v225
    %v227 = vpop.f32.mrb[0].mxu0
    %v228 = vadd.f32 %v125, %v227
    %v229 = vpop.f32.mrb[0].mxu0
    %230 = vmatprep.mubr.f32.mxu0 0.0
    %v231 = vand.u32 %v29, 4294901760
    %232 = vmatmul.mubr.f32.gmra.mrb[0].mxu0 %v231
    %v233 = vpop.f32.mrb[0].mxu0
    %v234 = vadd.f32 %v135, %v233
    %v235 = vpop.f32.mrb[0].mxu0
    %236 = vdwg.mxu0
    %237 = vmatprep.subr.mxu0 0.0
    %v238 = vand.u32 %v16, 4294901760
    %v239 = vsub.f32 %v16, %v238
    %240 = vmatpush1.msra.mxu0 %v239
    %241 = vmatprep.subr.mxu0 0.0
    %v242 = vand.u32 %v17, 4294901760
    %v243 = vsub.f32 %v17, %v242
    %244 = vmatpush1.msra.mxu0 %v243
    %245 = vmatprep.subr.mxu0 0.0
    %246 = vmatpush1.msra.mxu0 0.0
    %247 = vmatprep.subr.mxu0 0.0
    %248 = vmatpush1.msra.mxu0 0.0
    %249 = vmatprep.subr.mxu0 0.0
    %250 = vmatpush1.msra.mxu0 0.0
    %251 = vmatprep.subr.mxu0 0.0
    %252 = vmatpush1.msra.mxu0 0.0
    %253 = vmatprep.subr.mxu0 0.0
    %254 = vmatpush1.msra.mxu0 0.0
    %255 = vmatprep.subr.mxu0 0.0
    %256 = vmatpush1.msra.mxu0 0.0
    %257 = vmatprep.subr.mxu0 0.0
    %258 = vmatpush1.msra.mxu0 0.0
    %259 = vmatprep.subr.mxu0 0.0
    %260 = vmatpush1.msra.mxu0 0.0
    %261 = vmatprep.subr.mxu0 0.0
    %262 = vmatpush1.msra.mxu0 0.0
    %263 = vmatprep.subr.mxu0 0.0
    %264 = vmatpush1.msra.mxu0 0.0
    %265 = vmatprep.subr.mxu0 0.0
    %266 = vmatpush1.msra.mxu0 0.0
    %267 = vmatprep.subr.mxu0 0.0
    %268 = vmatpush1.msra.mxu0 0.0
    %269 = vmatprep.subr.mxu0 0.0
    %270 = vmatpush1.msra.mxu0 0.0
    %271 = vmatprep.subr.mxu0 0.0
    %272 = vmatpush1.msra.mxu0 0.0
    %273 = vmatprep.subr.mxu0 0.0
    %274 = vmatpush1.msra.mxu0 0.0
    %275 = vmatprep.subr.mxu0 0.0
    %276 = vmatpush1.msra.mxu0 0.0
    %277 = vmatprep.subr.mxu0 0.0
    %278 = vmatpush1.msra.mxu0 0.0
    %279 = vmatprep.subr.mxu0 0.0
    %280 = vmatpush1.msra.mxu0 0.0
    %281 = vmatprep.subr.mxu0 0.0
    %282 = vmatpush1.msra.mxu0 0.0
    %283 = vmatprep.subr.mxu0 0.0
    %284 = vmatpush1.msra.mxu0 0.0
    %285 = vmatprep.subr.mxu0 0.0
    %286 = vmatpush1.msra.mxu0 0.0
    %287 = vmatprep.subr.mxu0 0.0
    %288 = vmatpush1.msra.mxu0 0.0
    %289 = vmatprep.subr.mxu0 0.0
    %290 = vmatpush1.msra.mxu0 0.0
    %291 = vmatprep.subr.mxu0 0.0
    %292 = vmatpush1.msra.mxu0 0.0
    %293 = vmatprep.subr.mxu0 0.0
    %294 = vmatpush1.msra.mxu0 0.0
    %295 = vmatprep.subr.mxu0 0.0
    %296 = vmatpush1.msra.mxu0 0.0
    %297 = vmatprep.subr.mxu0 0.0
    %298 = vmatpush1.msra.mxu0 0.0
    %299 = vmatprep.subr.mxu0 0.0
    %300 = vmatpush1.msra.mxu0 0.0
    %301 = vmatprep.subr.mxu0 0.0
    %302 = vmatpush1.msra.mxu0 0.0
    %303 = vmatprep.subr.mxu0 0.0
    %304 = vmatpush1.msra.mxu0 0.0
    %305 = vmatprep.mubr.f32.mxu0 0.0
    %v306 = vand.u32 %v20, 4294901760
    %v307 = vsub.f32 %v20, %v306
    %308 = vmatmul.mubr.f32.gmra.mrb[0].mxu0 %v307
    %v309 = vpop.f32.mrb[0].mxu0
    %v310 = vadd.f32 %v216, %v309
    %v311 = vpop.f32.mrb[0].mxu0
    %312 = vmatprep.mubr.f32.mxu0 0.0
    %v313 = vand.u32 %v23, 4294901760
    %v314 = vsub.f32 %v23, %v313
    %315 = vmatmul.mubr.f32.gmra.mrb[0].mxu0 %v314
    %v316 = vpop.f32.mrb[0].mxu0
    %v317 = vadd.f32 %v222, %v316
    %v318 = vpop.f32.mrb[0].mxu0
    %319 = vmatprep.mubr.f32.mxu0 0.0
    %v320 = vand.u32 %v26, 4294901760
    %v321 = vsub.f32 %v26, %v320
    %322 = vmatmul.mubr.f32.gmra.mrb[0].mxu0 %v321
    %v323 = vpop.f32.mrb[0].mxu0
    %v324 = vadd.f32 %v228, %v323
    %v325 = vpop.f32.mrb[0].mxu0
    %326 = vmatprep.mubr.f32.mxu0 0.0
    %v327 = vand.u32 %v29, 4294901760
    %v328 = vsub.f32 %v29, %v327
    %329 = vmatmul.mubr.f32.gmra.mrb[0].mxu0 %v328
    %v330 = vpop.f32.mrb[0].mxu0
    %v331 = vadd.f32 %v234, %v330
    %v332 = vpop.f32.mrb[0].mxu0
    %333 = vdwg.mxu0
    %334 = vmatprep.subr.mxu0 0.0
    %v335 = vand.u32 %v16, 4294901760
    %336 = vmatpush1.msra.mxu0 %v335
    %337 = vmatprep.subr.mxu0 0.0
    %v338 = vand.u32 %v17, 4294901760
    %339 = vmatpush1.msra.mxu0 %v338
    %340 = vmatprep.subr.mxu0 0.0
    %341 = vmatpush1.msra.mxu0 0.0
    %342 = vmatprep.subr.mxu0 0.0
    %343 = vmatpush1.msra.mxu0 0.0
    %344 = vmatprep.subr.mxu0 0.0
    %345 = vmatpush1.msra.mxu0 0.0
    %346 = vmatprep.subr.mxu0 0.0
    %347 = vmatpush1.msra.mxu0 0.0
    %348 = vmatprep.subr.mxu0 0.0
    %349 = vmatpush1.msra.mxu0 0.0
    %350 = vmatprep.subr.mxu0 0.0
    %351 = vmatpush1.msra.mxu0 0.0
    %352 = vmatprep.subr.mxu0 0.0
    %353 = vmatpush1.msra.mxu0 0.0
    %354 = vmatprep.subr.mxu0 0.0
    %355 = vmatpush1.msra.mxu0 0.0
    %356 = vmatprep.subr.mxu0 0.0
    %357 = vmatpush1.msra.mxu0 0.0
    %358 = vmatprep.subr.mxu0 0.0
    %359 = vmatpush1.msra.mxu0 0.0
    %360 = vmatprep.subr.mxu0 0.0
    %361 = vmatpush1.msra.mxu0 0.0
    %362 = vmatprep.subr.mxu0 0.0
    %363 = vmatpush1.msra.mxu0 0.0
    %364 = vmatprep.subr.mxu0 0.0
    %365 = vmatpush1.msra.mxu0 0.0
    %366 = vmatprep.subr.mxu0 0.0
    %367 = vmatpush1.msra.mxu0 0.0
    %368 = vmatprep.subr.mxu0 0.0
    %369 = vmatpush1.msra.mxu0 0.0
    %370 = vmatprep.subr.mxu0 0.0
    %371 = vmatpush1.msra.mxu0 0.0
    %372 = vmatprep.subr.mxu0 0.0
    %373 = vmatpush1.msra.mxu0 0.0
    %374 = vmatprep.subr.mxu0 0.0
    %375 = vmatpush1.msra.mxu0 0.0
    %376 = vmatprep.subr.mxu0 0.0
    %377 = vmatpush1.msra.mxu0 0.0
    %378 = vmatprep.subr.mxu0 0.0
    %379 = vmatpush1.msra.mxu0 0.0
    %380 = vmatprep.subr.mxu0 0.0
    %381 = vmatpush1.msra.mxu0 0.0
    %382 = vmatprep.subr.mxu0 0.0
    %383 = vmatpush1.msra.mxu0 0.0
    %384 = vmatprep.subr.mxu0 0.0
    %385 = vmatpush1.msra.mxu0 0.0
    %386 = vmatprep.subr.mxu0 0.0
    %387 = vmatpush1.msra.mxu0 0.0
    %388 = vmatprep.subr.mxu0 0.0
    %389 = vmatpush1.msra.mxu0 0.0
    %390 = vmatprep.subr.mxu0 0.0
    %391 = vmatpush1.msra.mxu0 0.0
    %392 = vmatprep.subr.mxu0 0.0
    %393 = vmatpush1.msra.mxu0 0.0
    %394 = vmatprep.subr.mxu0 0.0
    %395 = vmatpush1.msra.mxu0 0.0
    %396 = vmatprep.subr.mxu0 0.0
    %397 = vmatpush1.msra.mxu0 0.0
    %398 = vmatprep.subr.mxu0 0.0
    %399 = vmatpush1.msra.mxu0 0.0
    %400 = vmatprep.mubr.f32.mxu0 0.0
    %v401 = vand.u32 %v20, 4294901760
    %v402 = vsub.f32 %v20, %v401
    %v403 = vand.u32 %v402, 4294901760
    %404 = vmatmul.mubr.f32.gmra.mrb[0].mxu0 %v403
    %v405 = vpop.f32.mrb[0].mxu0
    %v406 = vadd.f32 %v310, %v405
    %v407 = vpop.f32.mrb[0].mxu0
    %408 = vmatprep.mubr.f32.mxu0 0.0
    %v409 = vand.u32 %v23, 4294901760
    %v410 = vsub.f32 %v23, %v409
    %v411 = vand.u32 %v410, 4294901760
    %412 = vmatmul.mubr.f32.gmra.mrb[0].mxu0 %v411
    %v413 = vpop.f32.mrb[0].mxu0
    %v414 = vadd.f32 %v317, %v413
    %v415 = vpop.f32.mrb[0].mxu0
    %416 = vmatprep.mubr.f32.mxu0 0.0
    %v417 = vand.u32 %v26, 4294901760
    %v418 = vsub.f32 %v26, %v417
    %v419 = vand.u32 %v418, 4294901760
    %420 = vmatmul.mubr.f32.gmra.mrb[0].mxu0 %v419
    %v421 = vpop.f32.mrb[0].mxu0
    %v422 = vadd.f32 %v324, %v421
    %v423 = vpop.f32.mrb[0].mxu0
    %424 = vmatprep.mubr.f32.mxu0 0.0
    %v425 = vand.u32 %v29, 4294901760
    %v426 = vsub.f32 %v29, %v425
    %v427 = vand.u32 %v426, 4294901760
    %428 = vmatmul.mubr.f32.gmra.mrb[0].mxu0 %v427
    %v429 = vpop.f32.mrb[0].mxu0
    %v430 = vadd.f32 %v331, %v429
    %v431 = vpop.f32.mrb[0].mxu0
    %432 = vdwg.mxu0
    %433 = vmatprep.subr.mxu0 0.0
    %v434 = vand.u32 %v16, 4294901760
    %v435 = vsub.f32 %v16, %v434
    %v436 = vand.u32 %v435, 4294901760
    %437 = vmatpush1.msra.mxu0 %v436
    %438 = vmatprep.subr.mxu0 0.0
    %v439 = vand.u32 %v17, 4294901760
    %v440 = vsub.f32 %v17, %v439
    %v441 = vand.u32 %v440, 4294901760
    %442 = vmatpush1.msra.mxu0 %v441
    %443 = vmatprep.subr.mxu0 0.0
    %444 = vmatpush1.msra.mxu0 0.0
    %445 = vmatprep.subr.mxu0 0.0
    %446 = vmatpush1.msra.mxu0 0.0
    %447 = vmatprep.subr.mxu0 0.0
    %448 = vmatpush1.msra.mxu0 0.0
    %449 = vmatprep.subr.mxu0 0.0
    %450 = vmatpush1.msra.mxu0 0.0
    %451 = vmatprep.subr.mxu0 0.0
    %452 = vmatpush1.msra.mxu0 0.0
    %453 = vmatprep.subr.mxu0 0.0
    %454 = vmatpush1.msra.mxu0 0.0
    %455 = vmatprep.subr.mxu0 0.0
    %456 = vmatpush1.msra.mxu0 0.0
    %457 = vmatprep.subr.mxu0 0.0
    %458 = vmatpush1.msra.mxu0 0.0
    %459 = vmatprep.subr.mxu0 0.0
    %460 = vmatpush1.msra.mxu0 0.0
    %461 = vmatprep.subr.mxu0 0.0
    %462 = vmatpush1.msra.mxu0 0.0
    %463 = vmatprep.subr.mxu0 0.0
    %464 = vmatpush1.msra.mxu0 0.0
    %465 = vmatprep.subr.mxu0 0.0
    %466 = vmatpush1.msra.mxu0 0.0
    %467 = vmatprep.subr.mxu0 0.0
    %468 = vmatpush1.msra.mxu0 0.0
    %469 = vmatprep.subr.mxu0 0.0
    %470 = vmatpush1.msra.mxu0 0.0
    %471 = vmatprep.subr.mxu0 0.0
    %472 = vmatpush1.msra.mxu0 0.0
    %473 = vmatprep.subr.mxu0 0.0
    %474 = vmatpush1.msra.mxu0 0.0
    %475 = vmatprep.subr.mxu0 0.0
    %476 = vmatpush1.msra.mxu0 0.0
    %477 = vmatprep.subr.mxu0 0.0
    %478 = vmatpush1.msra.mxu0 0.0
    %479 = vmatprep.subr.mxu0 0.0
    %480 = vmatpush1.msra.mxu0 0.0
    %481 = vmatprep.subr.mxu0 0.0
    %482 = vmatpush1.msra.mxu0 0.0
    %483 = vmatprep.subr.mxu0 0.0
    %484 = vmatpush1.msra.mxu0 0.0
    %485 = vmatprep.subr.mxu0 0.0
    %486 = vmatpush1.msra.mxu0 0.0
    %487 = vmatprep.subr.mxu0 0.0
    %488 = vmatpush1.msra.mxu0 0.0
    %489 = vmatprep.subr.mxu0 0.0
    %490 = vmatpush1.msra.mxu0 0.0
    %491 = vmatprep.subr.mxu0 0.0
    %492 = vmatpush1.msra.mxu0 0.0
    %493 = vmatprep.subr.mxu0 0.0
    %494 = vmatpush1.msra.mxu0 0.0
    %495 = vmatprep.subr.mxu0 0.0
    %496 = vmatpush1.msra.mxu0 0.0
    %497 = vmatprep.subr.mxu0 0.0
    %498 = vmatpush1.msra.mxu0 0.0
    %499 = vmatprep.subr.mxu0 0.0
    %500 = vmatpush1.msra.mxu0 0.0
    %501 = vmatprep.subr.mxu0 0.0
    %502 = vmatpush1.msra.mxu0 0.0
    %503 = vmatprep.mubr.f32.mxu0 0.0
    %v504 = vand.u32 %v20, 4294901760
    %505 = vmatmul.mubr.f32.gmra.mrb[0].mxu0 %v504
    %v506 = vpop.f32.mrb[0].mxu0
    %v507 = vadd.f32 %v406, %v506
    %v508 = vpop.f32.mrb[0].mxu0
    %509 = vmatprep.mubr.f32.mxu0 0.0
    %v510 = vand.u32 %v23, 4294901760
    %511 = vmatmul.mubr.f32.gmra.mrb[0].mxu0 %v510
    %v512 = vpop.f32.mrb[0].mxu0
    %v513 = vadd.f32 %v414, %v512
    %v514 = vpop.f32.mrb[0].mxu0
    %515 = vmatprep.mubr.f32.mxu0 0.0
    %v516 = vand.u32 %v26, 4294901760
    %517 = vmatmul.mubr.f32.gmra.mrb[0].mxu0 %v516
    %v518 = vpop.f32.mrb[0].mxu0
    %v519 = vadd.f32 %v422, %v518
    %v520 = vpop.f32.mrb[0].mxu0
    %521 = vmatprep.mubr.f32.mxu0 0.0
    %v522 = vand.u32 %v29, 4294901760
    %523 = vmatmul.mubr.f32.gmra.mrb[0].mxu0 %v522
    %v524 = vpop.f32.mrb[0].mxu0
    %v525 = vadd.f32 %v430, %v524
    %v526 = vpop.f32.mrb[0].mxu0
    %527 = vdwg.mxu0
    %528 = vmatprep.subr.mxu0 0.0
    %v529 = vand.u32 %v16, 4294901760
    %530 = vmatpush1.msra.mxu0 %v529
    %531 = vmatprep.subr.mxu0 0.0
    %v532 = vand.u32 %v17, 4294901760
    %533 = vmatpush1.msra.mxu0 %v532
    %534 = vmatprep.subr.mxu0 0.0
    %535 = vmatpush1.msra.mxu0 0.0
    %536 = vmatprep.subr.mxu0 0.0
    %537 = vmatpush1.msra.mxu0 0.0
    %538 = vmatprep.subr.mxu0 0.0
    %539 = vmatpush1.msra.mxu0 0.0
    %540 = vmatprep.subr.mxu0 0.0
    %541 = vmatpush1.msra.mxu0 0.0
    %542 = vmatprep.subr.mxu0 0.0
    %543 = vmatpush1.msra.mxu0 0.0
    %544 = vmatprep.subr.mxu0 0.0
    %545 = vmatpush1.msra.mxu0 0.0
    %546 = vmatprep.subr.mxu0 0.0
    %547 = vmatpush1.msra.mxu0 0.0
    %548 = vmatprep.subr.mxu0 0.0
    %549 = vmatpush1.msra.mxu0 0.0
    %550 = vmatprep.subr.mxu0 0.0
    %551 = vmatpush1.msra.mxu0 0.0
    %552 = vmatprep.subr.mxu0 0.0
    %553 = vmatpush1.msra.mxu0 0.0
    %554 = vmatprep.subr.mxu0 0.0
    %555 = vmatpush1.msra.mxu0 0.0
    %556 = vmatprep.subr.mxu0 0.0
    %557 = vmatpush1.msra.mxu0 0.0
    %558 = vmatprep.subr.mxu0 0.0
    %559 = vmatpush1.msra.mxu0 0.0
    %560 = vmatprep.subr.mxu0 0.0
    %561 = vmatpush1.msra.mxu0 0.0
    %562 = vmatprep.subr.mxu0 0.0
    %563 = vmatpush1.msra.mxu0 0.0
    %564 = vmatprep.subr.mxu0 0.0
    %565 = vmatpush1.msra.mxu0 0.0
    %566 = vmatprep.subr.mxu0 0.0
    %567 = vmatpush1.msra.mxu0 0.0
    %568 = vmatprep.subr.mxu0 0.0
    %569 = vmatpush1.msra.mxu0 0.0
    %570 = vmatprep.subr.mxu0 0.0
    %571 = vmatpush1.msra.mxu0 0.0
    %572 = vmatprep.subr.mxu0 0.0
    %573 = vmatpush1.msra.mxu0 0.0
    %574 = vmatprep.subr.mxu0 0.0
    %575 = vmatpush1.msra.mxu0 0.0
    %576 = vmatprep.subr.mxu0 0.0
    %577 = vmatpush1.msra.mxu0 0.0
    %578 = vmatprep.subr.mxu0 0.0
    %579 = vmatpush1.msra.mxu0 0.0
    %580 = vmatprep.subr.mxu0 0.0
    %581 = vmatpush1.msra.mxu0 0.0
    %582 = vmatprep.subr.mxu0 0.0
    %583 = vmatpush1.msra.mxu0 0.0
    %584 = vmatprep.subr.mxu0 0.0
    %585 = vmatpush1.msra.mxu0 0.0
    %586 = vmatprep.subr.mxu0 0.0
    %587 = vmatpush1.msra.mxu0 0.0
    %588 = vmatprep.subr.mxu0 0.0
    %589 = vmatpush1.msra.mxu0 0.0
    %590 = vmatprep.subr.mxu0 0.0
    %591 = vmatpush1.msra.mxu0 0.0
    %592 = vmatprep.subr.mxu0 0.0
    %593 = vmatpush1.msra.mxu0 0.0
    %594 = vmatprep.mubr.f32.mxu0 0.0
    %v595 = vand.u32 %v20, 4294901760
    %596 = vmatmul.mubr.f32.gmra.mrb[0].mxu0 %v595
    %v597 = vpop.f32.mrb[0].mxu0
    %v598 = vadd.f32 %v507, %v597
    %v599 = vpop.f32.mrb[0].mxu0
    %600 = vmatprep.mubr.f32.mxu0 0.0
    %v601 = vand.u32 %v23, 4294901760
    %602 = vmatmul.mubr.f32.gmra.mrb[0].mxu0 %v601
    %v603 = vpop.f32.mrb[0].mxu0
    %v604 = vadd.f32 %v513, %v603
    %v605 = vpop.f32.mrb[0].mxu0
    %606 = vmatprep.mubr.f32.mxu0 0.0
    %v607 = vand.u32 %v26, 4294901760
    %608 = vmatmul.mubr.f32.gmra.mrb[0].mxu0 %v607
    %v609 = vpop.f32.mrb[0].mxu0
    %v610 = vadd.f32 %v519, %v609
    %v611 = vpop.f32.mrb[0].mxu0
    %612 = vmatprep.mubr.f32.mxu0 0.0
    %v613 = vand.u32 %v29, 4294901760
    %614 = vmatmul.mubr.f32.gmra.mrb[0].mxu0 %v613
    %v615 = vpop.f32.mrb[0].mxu0
    %v616 = vadd.f32 %v525, %v615
    %v617 = vpop.f32.mrb[0].mxu0
    %618 = vdwg.mxu0
    %619 = vst [vmem:[#allocation2] sm:$0xff] %v598
    %620 = vst [vmem:[#allocation2 + $0x8] sm:$0xff] %v604
    %621 = vst [vmem:[#allocation2 + $0x10] sm:$0xff] %v610
    %622 = vst [vmem:[#allocation2 + $0x18] sm:$0xff] %v616
    // Predicated region
    $region10: #{tpu_custom_call.1} parent=1 // pred_check
      _
    $region11: #{tpu_custom_call.1} parent=1 // pred_check_branch
      %624 = sbr.rel (0) target = $region13
    $region12: #{tpu_custom_call.1} parent=1 // pred_region
      %s626 = ssub.s32 512, 512
      %627 = vsyncadd [#allocation3], %s626
      %s628 = sshll.u32 [#allocation2], 4
      %s629 = int_to_ptr.vmem [resolvable:$true] %s628
      %634 = dma.vmem_to_hbm [thread:$0]  %s629, 512, %s2, [#allocation3], 128, 128, 8
    $region13: #{tpu_custom_call.1} parent=1 // pred_fallthru
      _
    // Predicated region
    $region14: #{tpu_custom_call.1} parent=1 // pred_check
      _
    $region15: #{tpu_custom_call.1} parent=1 // pred_check_branch
      %636 = sbr.rel (0) target = $region17
    $region16: #{tpu_custom_call.1} parent=1 // pred_region
      %637 = dma.done [#allocation3], 512
    $region17: #{tpu_custom_call.1} parent=1 // pred_fallthru
      _
    %638 = vsyncpa [#allocation3], 1

</llo_original>
